<compile_context>
chip_gen: v5e
topology: v5e:2x2
jax: 0.10.0
libtpu: 0.0.40
codegen_flags: <defaults>
</compile_context>

<pallas_src>
import functools

import jax
import jax.numpy as jnp
from jax import lax
from jax.experimental import pallas as pl
from jax.experimental.pallas import tpu as pltpu


_CONTRACT_LAST = (((1,), (1,)), ((), ()))     # contract last dims: "A @ B^T"


def _round_up(x, m):
    return ((x + m - 1) // m) * m


def _vmem_limit_bytes():
    """Explicit per-kernel VMEM limit: ~3/4 of the chip's physical VMEM
    (96 MiB on v5e/v6e, 48 MiB on v7x), with a conservative fallback."""
    try:
        phys = pltpu.get_tpu_info().vmem_capacity_bytes
    except Exception:
        phys = 64 << 20                     # assume the smallest (v7x per-core)
    return (int(phys) * 3) // 4


def _divisor_tiles(batch):
    """Legal second-minor batch tiles: divisors of `batch` that are multiples
    of 16 (bf16 sublane packing), falling back to multiples of 8, then the full
    batch (a full-extent block is always legal)."""
    m16 = [d for d in range(batch, 0, -1) if batch % d == 0 and d % 16 == 0]
    if m16:
        return m16
    m8 = [d for d in range(batch, 0, -1) if batch % d == 0 and d % 8 == 0]
    return m8 or [batch]


def _maybe_pad_batch(x, b_pad):
    if x.shape[0] == b_pad:
        return x
    return jnp.pad(x, [(0, b_pad - x.shape[0])] + [(0, 0)] * (x.ndim - 1))


def _pick_mlp_tiles(B, H, Cp, budget):
    """Largest (tb, tk) whose real double-buffered VMEM footprint fits."""
    tk = next((t for t in (512, 256, 128) if H % t == 0), H)

    def occupancy(tb):
        return (2 * tb * tk * 4        # cls block (fp32), double-buffered
                + 2 * H * tk * 2       # W1 k-slab (bf16), double-buffered
                + 2 * H * 4            # b1 (fp32)
                + 2 * Cp * H * 2       # resident W2 (bf16), double-buffered
                + 2 * Cp * 4           # b2 (fp32)
                + 2 * tb * Cp * 4      # out block (fp32), double-buffered
                + tb * H * 4)          # fp32 accumulator scratch

    tiles = _divisor_tiles(B)
    want_nb = 2 if B >= 32 else 1      # >=2 batch blocks feeds both v7x cores
    fitting = [t for t in tiles if occupancy(t) <= budget]
    if fitting:
        pref = [t for t in fitting if B // t >= want_nb]
        return (max(pref) if pref else max(fitting)), tk
    return min(tiles), tk              # best effort; vmem_limit_bytes is raised


def _pick_label_tile(B, H, C, budget):
    def occupancy(tb):
        return (2 * tb * H * 4          # cls block (fp32)
                + 2 * tb * C * H * 4    # label block (fp32)
                + 2 * tb * C * 4)       # out block (fp32)

    tiles = _divisor_tiles(B)
    want_nb = 2 if B >= 32 else 1
    fitting = [t for t in tiles if occupancy(t) <= budget]
    if fitting:
        pref = [t for t in fitting if B // t >= want_nb]
        return max(pref) if pref else max(fitting)
    return min(tiles)


# ---------------------------------------------------------------------------
# One-time parameter preparation (outside the per-step path)
# ---------------------------------------------------------------------------
def prepare_head_params(params, num_classes):
    """Cast the matmul weights to bf16 and zero-pad out_proj to a lane-dense
    (multiple-of-128) class dim ONCE, so every forward call reads the prepared
    arrays straight from HBM with no per-call cast/pad passes."""
    H = params["dense_w"].shape[0]
    C = int(num_classes)
    Cp = _round_up(C, 128)
    w2p = jnp.zeros((Cp, H), jnp.bfloat16).at[:C, :].set(
        params["out_w"].astype(jnp.bfloat16))
    b2p = jnp.zeros((1, Cp), jnp.float32).at[0, :C].set(
        params["out_b"].astype(jnp.float32))
    return {
        "w1_bf": params["dense_w"].astype(jnp.bfloat16),      # (H, H)  [out, in]
        "b1": params["dense_b"].astype(jnp.float32).reshape(1, H),
        "w2p_bf": w2p,                                        # (Cp, H) [out, in]
        "b2p": b2p,                                           # (1, Cp)
        "num_classes": C,
    }


# ---------------------------------------------------------------------------
# Kernel 1: MLP head — predicts = tanh(cls @ W1^T + b1) @ W2^T + b2
# ---------------------------------------------------------------------------
def _mlp_head_kernel(cls_ref, w1_ref, b1_ref, w2_ref, b2_ref, out_ref, acc_ref,
                     *, nk, tk):
    k = pl.program_id(1)

    @pl.when(k == 0)
    def _init():
        acc_ref[...] = jnp.zeros_like(acc_ref)

    # dense() partial product over the k-th slab of the contraction dim:
    # bf16 operands on the MXU (cls cast in-kernel, hidden under DMA),
    # fp32 accumulate, no transpose (contract last dims of both operands).
    acc_ref[...] += lax.dot_general(
        cls_ref[...].astype(jnp.bfloat16), w1_ref[...], _CONTRACT_LAST,
        preferred_element_type=jnp.float32)

    @pl.when(k == nk - 1)
    def _finalize():
        # tanh + out_proj chunked over the hidden dim with static slices:
        # avoids materializing a (tb, H) fp32 h (+ bf16 copy) and overlaps the
        # EUP tanh with the MXU out_proj.
        o = jnp.zeros(out_ref.shape, jnp.float32)
        for j in range(nk):                                    # unrolled, static
            sl = slice(j * tk, (j + 1) * tk)
            h = jnp.tanh(acc_ref[:, sl] + b1_ref[:, sl])       # fp32 bias + tanh
            o = o + lax.dot_general(
                h.astype(jnp.bfloat16), w2_ref[:, sl], _CONTRACT_LAST,
                preferred_element_type=jnp.float32)
        out_ref[...] = (o + b2_ref[...]).astype(out_ref.dtype)


def mlp_head(cls_feats, prepared):
    B, H = cls_feats.shape
    w1, b1 = prepared["w1_bf"], prepared["b1"]
    w2, b2 = prepared["w2p_bf"], prepared["b2p"]
    C = prepared["num_classes"]
    Cp = w2.shape[0]

    vmem_limit = _vmem_limit_bytes()
    # Pad an awkward batch (B > 8, B % 8 != 0) to a sublane multiple so a small
    # batch tile stays legal; divisible / tiny batches pass through untouched.
    Bp = _round_up(B, 8) if B > 8 else B
    cls_in = _maybe_pad_batch(cls_feats, Bp)

    tb, tk = _pick_mlp_tiles(Bp, H, Cp, budget=(vmem_limit * 4) // 5)
    nb, nk = Bp // tb, H // tk

    kernel = functools.partial(_mlp_head_kernel, nk=nk, tk=tk)
    out = pl.pallas_call(
        kernel,
        out_shape=jax.ShapeDtypeStruct((Bp, Cp), jnp.float32),
        grid=(nb, nk),
        in_specs=[
            pl.BlockSpec((tb, tk), lambda b, k: (b, k)),     # cls slab (fp32)
            pl.BlockSpec((H, tk), lambda b, k: (0, k)),      # W1 k-slab (bf16)
            pl.BlockSpec((1, H), lambda b, k: (0, 0)),       # b1 (resident)
            pl.BlockSpec((Cp, H), lambda b, k: (0, 0)),      # W2 (resident)
            pl.BlockSpec((1, Cp), lambda b, k: (0, 0)),      # b2 (resident)
        ],
        out_specs=pl.BlockSpec((tb, Cp), lambda b, k: (b, 0)),
        scratch_shapes=[pltpu.VMEM((tb, H), jnp.float32)],   # fp32 accumulator
        compiler_params=pltpu.CompilerParams(
            dimension_semantics=("parallel", "arbitrary"),
            vmem_limit_bytes=vmem_limit),
    )(cls_in, w1, b1, w2, b2)
    return out[:B, :C]


# ---------------------------------------------------------------------------
# Kernel 2: label-attention head — predicts[b,c] = sum_d cls[b,d] * label[b,c,d]
# ---------------------------------------------------------------------------
def _label_head_kernel(cls_ref, lab_ref, out_ref):
    # einsum('bd,bcd->bc') as a batched MXU contraction (unit M dim keeps the
    # class dim on lanes).  Inputs arrive fp32 straight from the base model;
    # the bf16 cast happens in-kernel (hidden under DMA), fp32 accumulate.
    cls = cls_ref[...].astype(jnp.bfloat16)          # [tb, H]
    lab = lab_ref[...].astype(jnp.bfloat16)          # [tb, C, H]
    scores = jnp.einsum("bod,bcd->boc", cls[:, None, :], lab,
                        preferred_element_type=jnp.float32)[:, 0, :]
    out_ref[...] = scores.astype(out_ref.dtype)      # [tb, C], unpadded


def label_head(cls_feats, label_feats):
    B, H = cls_feats.shape
    _, C, _ = label_feats.shape

    vmem_limit = _vmem_limit_bytes()
    Bp = _round_up(B, 8) if B > 8 else B
    cls_in = _maybe_pad_batch(cls_feats, Bp)
    lab_in = _maybe_pad_batch(label_feats, Bp)

    tb = _pick_label_tile(Bp, H, C, budget=(vmem_limit * 4) // 5)
    nb = Bp // tb

    out = pl.pallas_call(
        _label_head_kernel,
        out_shape=jax.ShapeDtypeStruct((Bp, C), jnp.float32),
        grid=(nb,),
        in_specs=[
            pl.BlockSpec((tb, H), lambda b: (b, 0)),
            pl.BlockSpec((tb, C, H), lambda b: (b, 0, 0)),
        ],
        out_specs=pl.BlockSpec((tb, C), lambda b: (b, 0)),
        compiler_params=pltpu.CompilerParams(
            dimension_semantics=("parallel",),
            vmem_limit_bytes=vmem_limit),
    )(cls_in, lab_in)
    return out[:B]


# ---------------------------------------------------------------------------
# Python wrapper mirroring EncoderModel.forward (head portion)
# ---------------------------------------------------------------------------
def encoder_head_forward(hiddens, prepared, *, method, num_classes):
    """hiddens: [B, S, H] = base_model(**batch).last_hidden_state"""
    # cls_feats / label_feats are required module outputs, so the XLA slices
    # below cost nothing beyond the PyTorch contract.
    cls_feats = hiddens[:, 0, :]                               # [B, H]
    if method in ("ce", "scl"):
        label_feats = None
        # dropout == identity at inference
        predicts = mlp_head(cls_feats, prepared)
    else:
        label_feats = hiddens[:, 1:num_classes + 1, :]         # [B, C, H]
        predicts = label_head(cls_feats, label_feats)
    return {"predicts": predicts, "cls_feats": cls_feats,
            "label_feats": label_feats}


def init_params(key, hidden_size, num_classes):
    """Deterministic init matching nn.Linear shapes (W: [out, in], b: [out])."""
    k1, k2, k3, k4 = jax.random.split(key, 4)
    bound1 = 1.0 / jnp.sqrt(hidden_size)
    return {
        "dense_w": jax.random.uniform(k1, (hidden_size, hidden_size),
                                      jnp.float32, -bound1, bound1),
        "dense_b": jax.random.uniform(k2, (hidden_size,),
                                      jnp.float32, -bound1, bound1),
        "out_w": jax.random.uniform(k3, (num_classes, hidden_size),
                                    jnp.float32, -bound1, bound1),
        "out_b": jax.random.uniform(k4, (num_classes,),
                                    jnp.float32, -bound1, bound1),
    }


if __name__ == "__main__":
    B, S, H, C = 2, 8, 32, 4                              # small synthetic sizes

    key = jax.random.PRNGKey(0)
    k_hid, k_par = jax.random.split(key)
    hiddens = jax.random.normal(k_hid, (B, S, H), jnp.float32)
    params = init_params(k_par, H, C)
    prepared = prepare_head_params(params, C)             # one-time weight prep

    # Branch 1: 'ce' (MLP head kernel)
    out_ce = encoder_head_forward(hiddens, prepared, method="ce", num_classes=C)
    jax.block_until_ready(out_ce["predicts"])

    # Branch 2: dual-label head ('bd,bcd->bc' kernel)
    out_dual = encoder_head_forward(hiddens, prepared, method="dualcl",
                                    num_classes=C)
    jax.block_until_ready(out_dual["predicts"])

    # --- sanity checks -----------------------------------------------------
    bf, f32 = jnp.bfloat16, jnp.float32
    cls = hiddens[:, 0, :]
    lab = hiddens[:, 1:C + 1, :]
    dims = (((1,), (1,)), ((), ()))

    # Reference with the same bf16 MXU casts as the kernels (tight check).
    h_ref = jnp.tanh(
        lax.dot_general(cls.astype(bf), params["dense_w"].astype(bf), dims,
                        preferred_element_type=f32) + params["dense_b"])
    ref_ce = lax.dot_general(h_ref.astype(bf), params["out_w"].astype(bf), dims,
                             preferred_element_type=f32) + params["out_b"]
    ref_dual = jnp.einsum("bd,bcd->bc", cls.astype(bf), lab.astype(bf),
                          preferred_element_type=f32)
    assert out_ce["predicts"].shape == (B, C)
    assert out_dual["predicts"].shape == (B, C)
    assert jnp.allclose(out_ce["predicts"], ref_ce, atol=1e-4, rtol=1e-3)
    assert jnp.allclose(out_dual["predicts"], ref_dual, atol=1e-4, rtol=1e-3)

    # Loose check against the pure-fp32 PyTorch-equivalent math.
    ref_ce_f32 = jnp.tanh(cls @ params["dense_w"].T + params["dense_b"]) \
        @ params["out_w"].T + params["out_b"]
    ref_dual_f32 = jnp.einsum("bd,bcd->bc", cls, lab)
    assert jnp.allclose(out_ce["predicts"], ref_ce_f32, atol=5e-2, rtol=5e-2)
    assert jnp.allclose(out_dual["predicts"], ref_dual_f32, atol=5e-2, rtol=5e-2)

    print("KERNEL_OK")
</pallas_src>

<mosaic_0001>
module attributes {stable_mosaic.version = 11 : i64} {
  func.func @_mlp_head_kernel(%arg0: i32, %arg1: i32, %arg2: memref<2x32xf32, #tpu.memory_space<vmem>>, %arg3: memref<32x32xbf16, #tpu.memory_space<vmem>>, %arg4: memref<1x32xf32, #tpu.memory_space<vmem>>, %arg5: memref<128x32xbf16, #tpu.memory_space<vmem>>, %arg6: memref<1x128xf32, #tpu.memory_space<vmem>>, %arg7: memref<2x128xf32, #tpu.memory_space<vmem>>, %arg8: memref<2x32xf32, #tpu.memory_space<vmem>>) attributes {dimension_semantics = [#tpu.dimension_semantics<parallel>, #tpu.dimension_semantics<arbitrary>], iteration_bounds = array<i64: 1, 1>, scalar_prefetch = 0 : i64, scratch_operands = 1 : i64, tpu.core_type = #tpu.core_type<tc>, window_params = [{transform_indices = @transform_0, window_bounds = array<i64: 2, 32>}, {transform_indices = @transform_1, window_bounds = array<i64: 32, 32>}, {pipeline_mode = #tpu.pipeline_mode<synchronous>, transform_indices = @transform_2, window_bounds = array<i64: 1, 32>}, {pipeline_mode = #tpu.pipeline_mode<synchronous>, transform_indices = @transform_3, window_bounds = array<i64: 128, 32>}, {pipeline_mode = #tpu.pipeline_mode<synchronous>, transform_indices = @transform_4, window_bounds = array<i64: 1, 128>}, {transform_indices = @transform_5, window_bounds = array<i64: 2, 128>}]} {
    %c0_i32 = arith.constant 0 : i32
    %0 = arith.cmpi eq, %arg1, %c0_i32 : i32
    %1 = arith.extui %0 : i1 to i32
    %c0_i32_0 = arith.constant 0 : i32
    %2 = arith.cmpi ne, %1, %c0_i32_0 : i32
    scf.if %2 {
      %cst_10 = arith.constant 0.000000e+00 : f32
      %13 = vector.broadcast %cst_10 : f32 to vector<2x32xf32>
      %c0_11 = arith.constant 0 : index
      %c0_12 = arith.constant 0 : index
      %14 = vector.load %arg8[%c0_11, %c0_12] : memref<2x32xf32, #tpu.memory_space<vmem>>, vector<2x32xf32>
      tpu.vector_store %arg8[%c0_11, %c0_12], %13 {strides = array<i32>} : memref<2x32xf32, #tpu.memory_space<vmem>>, vector<2x32xf32>,
    } else {
    }
    %c0 = arith.constant 0 : index
    %c0_1 = arith.constant 0 : index
    %3 = vector.load %arg8[%c0, %c0_1] : memref<2x32xf32, #tpu.memory_space<vmem>>, vector<2x32xf32>
    %c0_2 = arith.constant 0 : index
    %c0_3 = arith.constant 0 : index
    %4 = vector.load %arg2[%c0_2, %c0_3] : memref<2x32xf32, #tpu.memory_space<vmem>>, vector<2x32xf32>
    %5 = arith.truncf %4 : vector<2x32xf32> to vector<2x32xbf16>
    %c0_4 = arith.constant 0 : index
    %c0_5 = arith.constant 0 : index
    %6 = vector.load %arg3[%c0_4, %c0_5] : memref<32x32xbf16, #tpu.memory_space<vmem>>, vector<32x32xbf16>
    %cst = arith.constant dense<0.000000e+00> : vector<2x32xf32>
    %7 = tpu.matmul %5, %6, %cst {dimension_numbers = #tpu.dot_dimension_numbers<[1], [1], [0], [0], [0, 0, 1, 0], [], []>} : vector<2x32xbf16>, vector<32x32xbf16>, vector<2x32xf32> -> vector<2x32xf32>
    %8 = arith.addf %3, %7 : vector<2x32xf32>
    %c0_6 = arith.constant 0 : index
    %c0_7 = arith.constant 0 : index
    %9 = vector.load %arg8[%c0_6, %c0_7] : memref<2x32xf32, #tpu.memory_space<vmem>>, vector<2x32xf32>
    tpu.vector_store %arg8[%c0_6, %c0_7], %8 {strides = array<i32>} : memref<2x32xf32, #tpu.memory_space<vmem>>, vector<2x32xf32>,
    %c0_i32_8 = arith.constant 0 : i32
    %10 = arith.cmpi eq, %arg1, %c0_i32_8 : i32
    %11 = arith.extui %10 : i1 to i32
    %c0_i32_9 = arith.constant 0 : i32
    %12 = arith.cmpi ne, %11, %c0_i32_9 : i32
    scf.if %12 {
      %cst_10 = arith.constant 0.000000e+00 : f32
      %13 = vector.broadcast %cst_10 : f32 to vector<2x128xf32>
      %c0_11 = arith.constant 0 : index
      %c0_12 = arith.constant 0 : index
      %14 = vector.load %arg8[%c0_11, %c0_12] : memref<2x32xf32, #tpu.memory_space<vmem>>, vector<2x32xf32>
      %c0_13 = arith.constant 0 : index
      %c0_14 = arith.constant 0 : index
      %15 = vector.load %arg4[%c0_13, %c0_14] : memref<1x32xf32, #tpu.memory_space<vmem>>, vector<1x32xf32>
      %16 = vector.broadcast %15 : vector<1x32xf32> to vector<2x32xf32>
      %17 = arith.addf %14, %16 : vector<2x32xf32>
      %18 = math.tanh %17 : vector<2x32xf32>
      %19 = arith.truncf %18 : vector<2x32xf32> to vector<2x32xbf16>
      %c0_15 = arith.constant 0 : index
      %c0_16 = arith.constant 0 : index
      %20 = vector.load %arg5[%c0_15, %c0_16] : memref<128x32xbf16, #tpu.memory_space<vmem>>, vector<128x32xbf16>
      %cst_17 = arith.constant dense<0.000000e+00> : vector<2x128xf32>
      %21 = tpu.matmul %19, %20, %cst_17 {dimension_numbers = #tpu.dot_dimension_numbers<[1], [1], [0], [0], [0, 0, 1, 0], [], []>} : vector<2x32xbf16>, vector<128x32xbf16>, vector<2x128xf32> -> vector<2x128xf32>
      %22 = arith.addf %13, %21 : vector<2x128xf32>
      %c0_18 = arith.constant 0 : index
      %c0_19 = arith.constant 0 : index
      %23 = vector.load %arg6[%c0_18, %c0_19] : memref<1x128xf32, #tpu.memory_space<vmem>>, vector<1x128xf32>
      %24 = vector.broadcast %23 : vector<1x128xf32> to vector<2x128xf32>
      %25 = arith.addf %22, %24 : vector<2x128xf32>
      %c0_20 = arith.constant 0 : index
      %c0_21 = arith.constant 0 : index
      %26 = vector.load %arg7[%c0_20, %c0_21] : memref<2x128xf32, #tpu.memory_space<vmem>>, vector<2x128xf32>
      tpu.vector_store %arg7[%c0_20, %c0_21], %25 {strides = array<i32>} : memref<2x128xf32, #tpu.memory_space<vmem>>, vector<2x128xf32>,
    } else {
    }
    return
  }
  func.func @transform_0(%arg0: i32, %arg1: i32) -> (i32, i32) {
    %c0_i32 = arith.constant 0 : i32
    return %arg0, %arg1 : i32, i32
  }
  func.func @transform_1(%arg0: i32, %arg1: i32) -> (i32, i32) {
    %c0_i32 = arith.constant 0 : i32
    %c0_i32_0 = arith.constant 0 : i32
    return %c0_i32, %arg1 : i32, i32
  }
  func.func @transform_2(%arg0: i32, %arg1: i32) -> (i32, i32) {
    %c0_i32 = arith.constant 0 : i32
    %c0_i32_0 = arith.constant 0 : i32
    %c0_i32_1 = arith.constant 0 : i32
    return %c0_i32, %c0_i32_0 : i32, i32
  }
  func.func @transform_3(%arg0: i32, %arg1: i32) -> (i32, i32) {
    %c0_i32 = arith.constant 0 : i32
    %c0_i32_0 = arith.constant 0 : i32
    %c0_i32_1 = arith.constant 0 : i32
    return %c0_i32, %c0_i32_0 : i32, i32
  }
  func.func @transform_4(%arg0: i32, %arg1: i32) -> (i32, i32) {
    %c0_i32 = arith.constant 0 : i32
    %c0_i32_0 = arith.constant 0 : i32
    %c0_i32_1 = arith.constant 0 : i32
    return %c0_i32, %c0_i32_0 : i32, i32
  }
  func.func @transform_5(%arg0: i32, %arg1: i32) -> (i32, i32) {
    %c0_i32 = arith.constant 0 : i32
    %c0_i32_0 = arith.constant 0 : i32
    return %arg0, %c0_i32 : i32, i32
  }
}

</mosaic_0001>

<llo_original>
// kernel: tpu_custom_call.1
$region0: #{tpu_custom_call.1}
  #allocation0 [shape = 'u32[]', space=smem, size = 0x4, offset = 0x4, fixed_abs, tag = 'smem constant byte address 0x4 - core index']
  #allocation1 [shape = 'u32[72,128]{1,0:T(1,128)}', space=vmem, size = 0x9000, scoped, tag = 'internal scratch']
  #allocation2 [shape = 'f32[2,32]{1,0:T(2,128)}', space=vmem, size = 0x400, scoped, tag = 'scratch operand']
  %s0 = inlined_call_operand.vmem [shape: f32[2,32], index: 0, kind: input, shape index: {}]
  %s1 = inlined_call_operand.vmem [shape: bf16[32,32], index: 1, kind: input, shape index: {}]
  %s2 = inlined_call_operand.vmem [shape: f32[1,32], index: 2, kind: input, shape index: {}]
  %s3 = inlined_call_operand.vmem [shape: bf16[128,32], index: 3, kind: input, shape index: {}]
  %s4 = inlined_call_operand.vmem [shape: f32[1,128], index: 4, kind: input, shape index: {}]
  %s5 = inlined_call_operand.hbm [shape: f32[2,128], index: 5, kind: output, shape index: {}]
  %s6 = sld [smem:[#allocation0]]
  $region38: #{tpu_custom_call.1} parent=0
    _
  %s8 = ssub.s32 1, %s6
  %s9 = scalar_select 0, %s8, %s6
  $region1: #{tpu_custom_call.1} parent=0
    #allocation3 [shape = 'u8[1024]{0}', space=vmem, size = 0x400, scoped, tag = 'output window, operand 0, single buffered']
    #allocation4 [shape = 's32[1]{0}', space=sflag, size = 0x4, scoped, tag = 'scoped memory for tpu_custom_call.1']
    %10 = vsyncpa [#allocation4], 0
    // Predicated region
    $region2: #{tpu_custom_call.1} parent=1 // pred_check
      _
    $region3: #{tpu_custom_call.1} parent=1 // pred_check_branch
      %12 = sbr.rel (0) target = $region5
    $region4: #{tpu_custom_call.1} parent=1 // pred_region
      _
    $region5: #{tpu_custom_call.1} parent=1 // pred_fallthru
      _
    // Predicated region
    $region6: #{tpu_custom_call.1} parent=1 // pred_check
      _
    $region7: #{tpu_custom_call.1} parent=1 // pred_check_branch
      %14 = sbr.rel (0) target = $region9
    $region8: #{tpu_custom_call.1} parent=1 // pred_region
      _
    $region9: #{tpu_custom_call.1} parent=1 // pred_fallthru
      _
    // Predicated region
    $region10: #{tpu_custom_call.1} parent=1 // pred_check
      _
    $region11: #{tpu_custom_call.1} parent=1 // pred_check_branch
      %16 = sbr.rel (0) target = $region13
    $region12: #{tpu_custom_call.1} parent=1 // pred_region
      _
    $region13: #{tpu_custom_call.1} parent=1 // pred_fallthru
      _
    // Predicated region
    $region14: #{tpu_custom_call.1} parent=1 // pred_check
      _
    $region15: #{tpu_custom_call.1} parent=1 // pred_check_branch
      %18 = sbr.rel (0) target = $region17
    $region16: #{tpu_custom_call.1} parent=1 // pred_region
      _
    $region17: #{tpu_custom_call.1} parent=1 // pred_fallthru
      _
    // Predicated region
    $region18: #{tpu_custom_call.1} parent=1 // pred_check
      _
    $region19: #{tpu_custom_call.1} parent=1 // pred_check_branch
      %20 = sbr.rel (0) target = $region21
    $region20: #{tpu_custom_call.1} parent=1 // pred_region
      _
    $region21: #{tpu_custom_call.1} parent=1 // pred_fallthru
      _
    %p22 = scmp.eq.s32.totalorder 0, 0
    // Predicated region
    $region22: #{tpu_custom_call.1} parent=1 // pred_check
      %p23 = pneg %p22
    $region23: #{tpu_custom_call.1} parent=1 // pred_check_branch
      %25 = sbr.rel (%p23) target = $region25
    $region24: #{tpu_custom_call.1} parent=1 // pred_region
      %vm26 = vcmask 254976
      %27 = vst.msk [vmem:[#allocation2] sm:$0x3] %vm26, 0.0
    $region25: #{tpu_custom_call.1} parent=1 // pred_fallthru
      _
    %v28 = vld [vmem:[#allocation2] sm:$0x3]
    %v29 = vld [vmem:[%s0] sm:$0x3]
    %v30 = vpack.c.bf16 %v29, %v29
    %v31 = vld [vmem:[%s1] sm:$0xf]
    %v32 = vld [vmem:[%s1 + $0x4] sm:$0xf]
    %v33 = vld [vmem:[%s1 + $0x8] sm:$0xf]
    %v34 = vld [vmem:[%s1 + $0xc] sm:$0xf]
    %v39 = vunpack.c.l.b16 %v31
    %v40 = vunpack.c.l.b16 %v32
    %v41 = vunpack.c.l.b16 %v33
    %v42 = vunpack.c.l.b16 %v34
    %v43 = vpack.c.b16 %v40, %v39
    %v44 = vpack.c.b16 %v42, %v41
    %vm45 = vcmask 261120
    %v47 = vsel %vm45, %v30, 0
    %v50 = vsel %vm45, %v43, 0
    %v53 = vsel %vm45, %v44, 0
    %55 = vmatpush.bf16.xpose.msra.mxu0 0
    %56 = vmatpush.bf16.xpose.msra.mxu0 0
    %57 = vmatpush.bf16.xpose.msra.mxu0 0
    %58 = vmatpush.bf16.xpose.msra.mxu0 0
    %59 = vmatpush.bf16.xpose.msra.mxu0 0
    %60 = vmatpush.bf16.xpose.msra.mxu0 0
    %61 = vmatpush.bf16.xpose.msra.mxu0 %v53
    %62 = vmatpush.bf16.xpose.msra.mxu0 %v50
    %63 = vmatmul.bf16.gmra.mxu0 %v47
    %v64 = vpop.f32.mrf.mxu0
    %v65 = vadd.f32 0.0, %v64
    %v66 = vpop.f32.mrf.mxu0
    %67 = vdwg.mxu0
    %v68 = vadd.f32 %v28, %v65
    %vm69 = vcmask 254976
    %70 = vst.msk [vmem:[#allocation2] sm:$0x3] %vm69, %v68
    // Predicated region
    $region26: #{tpu_custom_call.1} parent=1 // pred_check
      %p71 = pneg %p22
    $region27: #{tpu_custom_call.1} parent=1 // pred_check_branch
      %73 = sbr.rel (%p71) target = $region29
    $region28: #{tpu_custom_call.1} parent=1 // pred_region
      %v74 = vld [vmem:[#allocation2] sm:$0x3]
      %v75 = vld [vmem:[%s2] sm:$0x1]
      %v77 = vperm.slane %v75, 0
      %v79 = vadd.f32 %v74, %v77
      %v80 = vtanh.pop %v79
      %v81 = vpack.c.bf16 %v80, %v80
      %v82 = vld [vmem:[%s3] sm:$0xf]
      %v83 = vld [vmem:[%s3 + $0x4] sm:$0xf]
      %v84 = vld [vmem:[%s3 + $0x8] sm:$0xf]
      %v85 = vld [vmem:[%s3 + $0xc] sm:$0xf]
      %v86 = vld [vmem:[%s3 + $0x10] sm:$0xf]
      %v87 = vld [vmem:[%s3 + $0x14] sm:$0xf]
      %v88 = vld [vmem:[%s3 + $0x18] sm:$0xf]
      %v89 = vld [vmem:[%s3 + $0x1c] sm:$0xf]
      %v90 = vld [vmem:[%s3 + $0x20] sm:$0xf]
      %v91 = vld [vmem:[%s3 + $0x24] sm:$0xf]
      %v92 = vld [vmem:[%s3 + $0x28] sm:$0xf]
      %v93 = vld [vmem:[%s3 + $0x2c] sm:$0xf]
      %v94 = vld [vmem:[%s3 + $0x30] sm:$0xf]
      %v95 = vld [vmem:[%s3 + $0x34] sm:$0xf]
      %v96 = vld [vmem:[%s3 + $0x38] sm:$0xf]
      %v97 = vld [vmem:[%s3 + $0x3c] sm:$0xf]
      %v98 = vld [vmem:[%s4] sm:$0x1]
      %v100 = vperm.slane %v98, 0
      %v118 = vunpack.c.l.b16 %v82
      %v119 = vunpack.c.l.b16 %v83
      %v120 = vunpack.c.l.b16 %v84
      %v121 = vunpack.c.l.b16 %v85
      %v122 = vunpack.c.l.b16 %v86
      %v123 = vunpack.c.l.b16 %v87
      %v124 = vunpack.c.l.b16 %v88
      %v125 = vunpack.c.l.b16 %v89
      %v126 = vunpack.c.l.b16 %v90
      %v127 = vunpack.c.l.b16 %v91
      %v128 = vunpack.c.l.b16 %v92
      %v129 = vunpack.c.l.b16 %v93
      %v130 = vunpack.c.l.b16 %v94
      %v131 = vunpack.c.l.b16 %v95
      %v132 = vunpack.c.l.b16 %v96
      %v133 = vunpack.c.l.b16 %v97
      %v134 = vpack.c.b16 %v119, %v118
      %v135 = vpack.c.b16 %v121, %v120
      %v136 = vpack.c.b16 %v123, %v122
      %v137 = vpack.c.b16 %v125, %v124
      %v138 = vpack.c.b16 %v127, %v126
      %v139 = vpack.c.b16 %v129, %v128
      %v140 = vpack.c.b16 %v131, %v130
      %v141 = vpack.c.b16 %v133, %v132
      %v143 = vsel %vm45, %v81, 0
      %v146 = vsel %vm45, %v134, 0
      %v149 = vsel %vm45, %v135, 0
      %v152 = vsel %vm45, %v136, 0
      %v155 = vsel %vm45, %v137, 0
      %v158 = vsel %vm45, %v138, 0
      %v161 = vsel %vm45, %v139, 0
      %v164 = vsel %vm45, %v140, 0
      %v167 = vsel %vm45, %v141, 0
      %169 = vmatpush.bf16.xpose.msra.mxu0 %v167
      %170 = vmatpush.bf16.xpose.msra.mxu0 %v164
      %171 = vmatpush.bf16.xpose.msra.mxu0 %v161
      %172 = vmatpush.bf16.xpose.msra.mxu0 %v158
      %173 = vmatpush.bf16.xpose.msra.mxu0 %v155
      %174 = vmatpush.bf16.xpose.msra.mxu0 %v152
      %175 = vmatpush.bf16.xpose.msra.mxu0 %v149
      %176 = vmatpush.bf16.xpose.msra.mxu0 %v146
      %177 = vmatmul.bf16.gmra.mxu0 %v143
      %v178 = vpop.f32.mrf.mxu0
      %v179 = vadd.f32 %v100, %v178
      %v180 = vpop.f32.mrf.mxu0
      %181 = vdwg.mxu0
      %182 = vst [vmem:[#allocation3] sm:$0x3] %v179
    $region29: #{tpu_custom_call.1} parent=1 // pred_fallthru
      _
    // Predicated region
    $region30: #{tpu_custom_call.1} parent=1 // pred_check
      _
    $region31: #{tpu_custom_call.1} parent=1 // pred_check_branch
      %184 = sbr.rel (0) target = $region33
    $region32: #{tpu_custom_call.1} parent=1 // pred_region
      %186 = vsyncadd [#allocation4], 0
      %s188 = sshll.u32 [#allocation3], 4
      %s189 = int_to_ptr.vmem [resolvable:$true] %s188
      %s190 = sshll.u32 %s5, 4
      %s191 = int_to_ptr.hbm [resolvable:$true] %s190
      %193 = dma.vmem_to_hbm [thread:$0]  %s189, 32, %s191, [#allocation4]
    $region33: #{tpu_custom_call.1} parent=1 // pred_fallthru
      _
    // Predicated region
    $region34: #{tpu_custom_call.1} parent=1 // pred_check
      _
    $region35: #{tpu_custom_call.1} parent=1 // pred_check_branch
      %195 = sbr.rel (0) target = $region37
    $region36: #{tpu_custom_call.1} parent=1 // pred_region
      %197 = dma.done [#allocation4], 32
    $region37: #{tpu_custom_call.1} parent=1 // pred_fallthru
      _
    %198 = vsyncpa [#allocation4], 1

</llo_original>
